<compile_context>
chip_gen: v7x
topology: tpu7x:2x2x1
jax: 0.10.0
libtpu: 0.0.40
codegen_flags: <defaults>
</compile_context>

<pallas_src>
import jax
import jax.numpy as jnp
from jax import lax
from jax.experimental import pallas as pl
from jax.experimental.pallas import tpu as pltpu

_EPS = 1e-10
_LANES = 128


def _rsum(v):
    # Row-block (sublane) adds on the VPU first, one small cross-lane reduce last.
    return jnp.sum(jnp.sum(v, axis=0, keepdims=True))


# ---------------------------------------------------------------------------
# Resident (single-block) kernel: whole slab lives in VMEM.
# ---------------------------------------------------------------------------
def _bn_resident_kernel(fscal_ref, iscal_ref, x_ref, o_ref):
    # fscal (SMEM f32[3]): [gamma, beta, thres]
    # iscal (SMEM i32[2]): [n_valid, n_pad]   (padded tail is exact zeros)
    gamma = fscal_ref[0]
    beta = fscal_ref[1]
    thres = fscal_ref[2]
    n = iscal_ref[0].astype(jnp.float32)
    pad = iscal_ref[1].astype(jnp.float32)

    x = x_ref[...].astype(jnp.float32)

    # ---- pass 1: mean / unbiased var in ONE sweep (zero padding adds 0) ----
    s1 = _rsum(x)
    s2 = _rsum(x * x)
    mean1 = s1 / n
    var1 = (s2 - n * mean1 * mean1) / (n - 1.0)
    bound = thres * jnp.sqrt(var1 + _EPS)

    # ---- selection: |x - mean1| < thres*std1, as two scalar-bound compares ----
    sel = jnp.logical_and(x > mean1 - bound, x < mean1 + bound)
    # every padded zero is selected iff |mean1| < bound -> purely scalar correction
    pad_sel = jnp.where(jnp.abs(mean1) < bound, pad, 0.0)

    cnt = _rsum(sel.astype(jnp.float32)) - pad_sel
    mean2 = _rsum(jnp.where(sel, x, 0.0)) / cnt          # padded zeros add nothing
    d2 = x - mean2
    ss = _rsum(jnp.where(sel, d2 * d2, 0.0)) - pad_sel * mean2 * mean2
    var2 = ss / (cnt - 1.0)

    # ---- fused affine epilogue: out = x*scale + bias ----
    scale = gamma / jnp.sqrt(var2 + _EPS)
    bias = beta - mean2 * scale
    o_ref[...] = (x * scale + bias).astype(o_ref.dtype)


# ---------------------------------------------------------------------------
# Tiled path, phase kernels (for inputs above the VMEM residency budget).
# ---------------------------------------------------------------------------
def _bn_stats_kernel(fscal_ref, iscal_ref, x_ref,
                     s1_ref, s2_ref, t1_ref, t2_ref, cnt_ref):
    # fscal (SMEM f32[1]): [thres];  iscal (SMEM i32[2]): [n_valid, rows_valid]
    # outputs: (1,128) per-lane partial sums, resident across the whole grid.
    p = pl.program_id(0)        # 0: global sum/sumsq, 1: filtered (shifted) sums
    t = pl.program_id(1)
    tr = x_ref.shape[0]

    thres = fscal_ref[0]
    n = iscal_ref[0].astype(jnp.float32)
    rows_valid = iscal_ref[1]

    # int32 mask for the rows of the (possibly out-of-bounds) edge tile
    row = t * tr + lax.broadcasted_iota(jnp.int32, x_ref.shape, 0)
    in_bounds = row < rows_valid
    x = x_ref[...].astype(jnp.float32)

    @pl.when(jnp.logical_and(p == 0, t == 0))
    def _init():
        s1_ref[...] = jnp.zeros_like(s1_ref)
        s2_ref[...] = jnp.zeros_like(s2_ref)
        t1_ref[...] = jnp.zeros_like(t1_ref)
        t2_ref[...] = jnp.zeros_like(t2_ref)
        cnt_ref[...] = jnp.zeros_like(cnt_ref)

    @pl.when(p == 0)
    def _pass1():
        xm = jnp.where(in_bounds, x, 0.0)
        s1_ref[...] += jnp.sum(xm, axis=0, keepdims=True)
        s2_ref[...] += jnp.sum(xm * xm, axis=0, keepdims=True)

    @pl.when(p == 1)
    def _pass2():
        s1 = jnp.sum(s1_ref[...])
        s2 = jnp.sum(s2_ref[...])
        mean1 = s1 / n
        var1 = (s2 - n * mean1 * mean1) / (n - 1.0)
        bound = thres * jnp.sqrt(var1 + _EPS)
        sel = jnp.logical_and(x > mean1 - bound, x < mean1 + bound)
        sel = jnp.logical_and(sel, in_bounds)
        d = jnp.where(sel, x - mean1, 0.0)     # shifted by mean1 (numerics)
        t1_ref[...] += jnp.sum(d, axis=0, keepdims=True)
        t2_ref[...] += jnp.sum(d * d, axis=0, keepdims=True)
        cnt_ref[...] += jnp.sum(sel.astype(jnp.float32), axis=0, keepdims=True)


def _bn_apply_kernel(fscal_ref, x_ref, o_ref):
    # fscal (SMEM f32[2]): [scale, bias]; fused multiply-add per tile.
    o_ref[...] = (x_ref[...].astype(jnp.float32) * fscal_ref[0]
                  + fscal_ref[1]).astype(o_ref.dtype)


# ---------------------------------------------------------------------------
# Wrappers
# ---------------------------------------------------------------------------
def _resident_call(x2d, gamma, beta, thres, n, pad, out_dtype):
    rows, cols = x2d.shape
    fscal = jnp.array([gamma, beta, thres], dtype=jnp.float32)
    iscal = jnp.array([n, pad], dtype=jnp.int32)
    slab_f32 = rows * cols * 4
    vmem_limit = (rows * cols * x2d.dtype.itemsize                 # input slab
                  + rows * cols * jnp.dtype(out_dtype).itemsize    # output slab
                  + 3 * slab_f32                                   # live f32 temps
                  + (2 << 20))                                     # headroom
    vmem_limit = int(min(max(vmem_limit, 4 << 20), 100 << 20))
    return pl.pallas_call(
        _bn_resident_kernel,
        out_shape=jax.ShapeDtypeStruct((rows, cols), out_dtype),
        in_specs=[
            pl.BlockSpec(memory_space=pltpu.MemorySpace.SMEM),
            pl.BlockSpec(memory_space=pltpu.MemorySpace.SMEM),
            pl.BlockSpec(memory_space=pltpu.MemorySpace.VMEM),
        ],
        out_specs=pl.BlockSpec(memory_space=pltpu.MemorySpace.VMEM),
        compiler_params=pltpu.CompilerParams(vmem_limit_bytes=vmem_limit),
    )(fscal, iscal, x2d)


def _tiled_call(x2d, gamma, beta, thres, n, pad, out_dtype, tile_rows):
    rows, cols = x2d.shape
    tr = int(min(tile_rows, rows))
    tr = max(8, (tr // 8) * 8)
    num_tiles = -(-rows // tr)

    fscal = jnp.array([thres], dtype=jnp.float32)
    iscal = jnp.array([n, rows], dtype=jnp.int32)
    vec = jax.ShapeDtypeStruct((1, cols), jnp.float32)
    vec_spec = pl.BlockSpec((1, cols), lambda p, t: (0, 0))

    s1, s2, t1, t2, cnt_raw = pl.pallas_call(
        _bn_stats_kernel,
        out_shape=(vec, vec, vec, vec, vec),
        grid=(2, num_tiles),
        in_specs=[
            pl.BlockSpec(memory_space=pltpu.MemorySpace.SMEM),
            pl.BlockSpec(memory_space=pltpu.MemorySpace.SMEM),
            pl.BlockSpec((tr, cols), lambda p, t: (t, 0)),
        ],
        out_specs=(vec_spec, vec_spec, vec_spec, vec_spec, vec_spec),
        compiler_params=pltpu.CompilerParams(
            dimension_semantics=("arbitrary", "arbitrary"),
            vmem_limit_bytes=32 << 20),
    )(fscal, iscal, x2d)

    # Final scalar math (a handful of XLA scalar ops).
    s1 = jnp.sum(s1)
    s2 = jnp.sum(s2)
    t1 = jnp.sum(t1)
    t2 = jnp.sum(t2)
    cnt_raw = jnp.sum(cnt_raw)
    n_f = jnp.float32(n)
    mean1 = s1 / n_f
    var1 = (s2 - n_f * mean1 * mean1) / (n_f - 1.0)
    bound = thres * jnp.sqrt(var1 + _EPS)
    # remove the zero-padded tail's contribution to the selected statistics
    pad_sel = jnp.where(jnp.abs(mean1) < bound, jnp.float32(pad), jnp.float32(0.0))
    cnt = cnt_raw - pad_sel
    t1c = t1 + pad_sel * mean1                 # each padded zero added (0 - mean1)
    t2c = t2 - pad_sel * mean1 * mean1
    md = t1c / cnt
    mean2 = mean1 + md
    var2 = (t2c - cnt * md * md) / (cnt - 1.0)
    scale = gamma / jnp.sqrt(var2 + _EPS)
    bias = beta - mean2 * scale
    params = jnp.stack([scale, bias]).astype(jnp.float32)

    return pl.pallas_call(
        _bn_apply_kernel,
        out_shape=jax.ShapeDtypeStruct((rows, cols), out_dtype),
        grid=(num_tiles,),
        in_specs=[
            pl.BlockSpec(memory_space=pltpu.MemorySpace.SMEM),
            pl.BlockSpec((tr, cols), lambda t: (t, 0)),
        ],
        out_specs=pl.BlockSpec((tr, cols), lambda t: (t, 0)),
        compiler_params=pltpu.CompilerParams(
            dimension_semantics=("parallel",),
            vmem_limit_bytes=32 << 20),
    )(params, x2d)


def bn1d_filtered(xorig, gamma, beta, thres=4.0, *,
                  max_resident_elems=2 * 1024 * 1024, tile_rows=512):
    """Pallas implementation of BN1dFitlered.forward (same shape/dtype as input)."""
    orig_shape = xorig.shape
    out_dtype = xorig.dtype
    n = int(xorig.size)
    cols = _LANES
    rows = -(-n // cols)
    rows = max(8, ((rows + 7) // 8) * 8)   # multiple of 8 sublanes
    padded = rows * cols
    pad = padded - n

    flat = xorig.reshape(-1)
    if pad:
        flat = jnp.pad(flat, (0, pad))     # only when size is not 8*128-aligned
    x2d = flat.reshape(rows, cols)

    if n <= max_resident_elems:
        out2d = _resident_call(x2d, gamma, beta, thres, n, pad, out_dtype)
    else:
        out2d = _tiled_call(x2d, gamma, beta, thres, n, pad, out_dtype, tile_rows)

    out = out2d.reshape(-1)
    if pad:
        out = out[:n]
    return out.reshape(orig_shape)


def _reference_jax(xorig, gamma, beta, thres):
    # Pure-JAX reference mirroring the PyTorch code (unbiased variance).
    x = xorig.reshape(-1).astype(jnp.float32)
    n = x.shape[0]
    mean = jnp.mean(x)
    var = jnp.sum((x - mean) ** 2) / (n - 1)
    normalized = (x - mean) / jnp.sqrt(var + _EPS)
    sel = (normalized < thres) & (normalized > -thres)
    cnt = jnp.sum(sel.astype(jnp.float32))
    mean2 = jnp.sum(jnp.where(sel, x, 0.0)) / cnt
    var2 = jnp.sum(jnp.where(sel, (x - mean2) ** 2, 0.0)) / (cnt - 1.0)
    return gamma * (xorig.astype(jnp.float32) - mean2) / jnp.sqrt(var2 + _EPS) + beta


if __name__ == "__main__":
    key = jax.random.PRNGKey(0)
    gamma, beta, thres = 1.0, 0.0, 4.0

    # Case 1: aligned NCHW input -> resident path, no wrapper pad/cast copies.
    x1 = jax.random.normal(key, (2, 4, 16, 16), dtype=jnp.float32)
    x1 = x1.at[0, 0, 0, 0].set(50.0).at[1, 3, 7, 7].set(-40.0)
    out1 = jax.block_until_ready(bn1d_filtered(x1, gamma, beta, thres))
    ref1 = _reference_jax(x1, gamma, beta, thres)
    assert out1.shape == x1.shape and out1.dtype == x1.dtype
    assert jnp.allclose(out1, ref1, rtol=1e-4, atol=1e-4), "resident path mismatch"

    # Case 2: unaligned size -> exercises the zero-pad scalar correction.
    k2 = jax.random.split(key)[0]
    x2 = jax.random.normal(k2, (2, 3, 5, 7), dtype=jnp.float32)
    x2 = x2.at[0, 0, 0, 0].set(30.0)
    out2 = jax.block_until_ready(bn1d_filtered(x2, gamma, beta, thres))
    ref2 = _reference_jax(x2, gamma, beta, thres)
    assert jnp.allclose(out2, ref2, rtol=1e-4, atol=1e-4), "padded resident mismatch"

    # Case 3: force the tiled 3-phase path (several grid steps + a partial edge tile).
    k3 = jax.random.split(key, 3)[2]
    x3 = jax.random.normal(k3, (3, 5, 16, 16), dtype=jnp.float32)
    x3 = x3.at[0, 0, 0, 0].set(25.0).at[2, 4, 15, 15].set(-25.0)
    out3 = jax.block_until_ready(
        bn1d_filtered(x3, gamma, beta, thres, max_resident_elems=0, tile_rows=24))
    ref3 = _reference_jax(x3, gamma, beta, thres)
    assert jnp.allclose(out3, ref3, rtol=1e-4, atol=1e-4), "tiled path mismatch"

    print("KERNEL_OK")
</pallas_src>

<mosaic_0001>
module attributes {stable_mosaic.version = 11 : i64} {
  func.func @_bn_resident_kernel(%arg0: memref<3xf32, #tpu.memory_space<smem>>, %arg1: memref<2xi32, #tpu.memory_space<smem>>, %arg2: memref<16x128xf32, #tpu.memory_space<vmem>>, %arg3: memref<16x128xf32, #tpu.memory_space<vmem>>) attributes {dimension_semantics = [], scalar_prefetch = 0 : i64, scratch_operands = 0 : i64, tpu.core_type = #tpu.core_type<tc>} {
    %c0 = arith.constant 0 : index
    %0 = memref.load %arg0[%c0] : memref<3xf32, #tpu.memory_space<smem>>
    %c1 = arith.constant 1 : index
    %1 = memref.load %arg0[%c1] : memref<3xf32, #tpu.memory_space<smem>>
    %c2 = arith.constant 2 : index
    %2 = memref.load %arg0[%c2] : memref<3xf32, #tpu.memory_space<smem>>
    %c0_0 = arith.constant 0 : index
    %3 = memref.load %arg1[%c0_0] : memref<2xi32, #tpu.memory_space<smem>>
    %4 = arith.sitofp %3 : i32 to f32
    %c1_1 = arith.constant 1 : index
    %5 = memref.load %arg1[%c1_1] : memref<2xi32, #tpu.memory_space<smem>>
    %6 = arith.sitofp %5 : i32 to f32
    %c0_2 = arith.constant 0 : index
    %c0_3 = arith.constant 0 : index
    %7 = vector.load %arg2[%c0_2, %c0_3] : memref<16x128xf32, #tpu.memory_space<vmem>>, vector<16x128xf32>
    %cst = arith.constant dense<0.000000e+00> : vector<128xf32>
    %8 = vector.multi_reduction <add>, %7, %cst [0] : vector<16x128xf32> to vector<128xf32>
    %9 = vector.shape_cast %8 : vector<128xf32> to vector<1x128xf32>
    %10 = vector.shape_cast %9 : vector<1x128xf32> to vector<1x1x128xf32>
    %cst_4 = arith.constant dense<0.000000e+00> : vector<1xf32>
    %11 = vector.multi_reduction <add>, %10, %cst_4 [1, 2] : vector<1x1x128xf32> to vector<1xf32>
    %12 = vector.shape_cast %11 : vector<1xf32> to vector<1x1x1xf32>
    %13 = vector.extract %12[0, 0, 0] : f32 from vector<1x1x1xf32>
    %14 = arith.mulf %7, %7 : vector<16x128xf32>
    %cst_5 = arith.constant dense<0.000000e+00> : vector<128xf32>
    %15 = vector.multi_reduction <add>, %14, %cst_5 [0] : vector<16x128xf32> to vector<128xf32>
    %16 = vector.shape_cast %15 : vector<128xf32> to vector<1x128xf32>
    %17 = vector.shape_cast %16 : vector<1x128xf32> to vector<1x1x128xf32>
    %cst_6 = arith.constant dense<0.000000e+00> : vector<1xf32>
    %18 = vector.multi_reduction <add>, %17, %cst_6 [1, 2] : vector<1x1x128xf32> to vector<1xf32>
    %19 = vector.shape_cast %18 : vector<1xf32> to vector<1x1x1xf32>
    %20 = vector.extract %19[0, 0, 0] : f32 from vector<1x1x1xf32>
    %21 = arith.divf %13, %4 : f32
    %22 = arith.mulf %4, %21 : f32
    %23 = arith.mulf %22, %21 : f32
    %24 = arith.subf %20, %23 : f32
    %cst_7 = arith.constant 1.000000e+00 : f32
    %25 = arith.subf %4, %cst_7 : f32
    %26 = arith.divf %24, %25 : f32
    %cst_8 = arith.constant 1.000000e-10 : f32
    %27 = arith.addf %26, %cst_8 : f32
    %28 = math.sqrt %27 : f32
    %29 = arith.mulf %2, %28 : f32
    %30 = arith.subf %21, %29 : f32
    %31 = vector.broadcast %30 : f32 to vector<16x128xf32>
    %32 = arith.cmpf ogt, %7, %31 : vector<16x128xf32>
    %33 = arith.addf %21, %29 : f32
    %34 = vector.broadcast %33 : f32 to vector<16x128xf32>
    %35 = arith.cmpf olt, %7, %34 : vector<16x128xf32>
    %36 = arith.andi %32, %35 : vector<16x128xi1>
    %37 = math.absf %21 : f32
    %38 = arith.cmpf olt, %37, %29 : f32
    %cst_9 = arith.constant 0.000000e+00 : f32
    %39 = arith.select %38, %6, %cst_9 : f32
    %40 = arith.extui %36 : vector<16x128xi1> to vector<16x128xi32>
    %41 = arith.sitofp %40 : vector<16x128xi32> to vector<16x128xf32>
    %cst_10 = arith.constant dense<0.000000e+00> : vector<128xf32>
    %42 = vector.multi_reduction <add>, %41, %cst_10 [0] : vector<16x128xf32> to vector<128xf32>
    %43 = vector.shape_cast %42 : vector<128xf32> to vector<1x128xf32>
    %44 = vector.shape_cast %43 : vector<1x128xf32> to vector<1x1x128xf32>
    %cst_11 = arith.constant dense<0.000000e+00> : vector<1xf32>
    %45 = vector.multi_reduction <add>, %44, %cst_11 [1, 2] : vector<1x1x128xf32> to vector<1xf32>
    %46 = vector.shape_cast %45 : vector<1xf32> to vector<1x1x1xf32>
    %47 = vector.extract %46[0, 0, 0] : f32 from vector<1x1x1xf32>
    %48 = arith.subf %47, %39 : f32
    %cst_12 = arith.constant 0.000000e+00 : f32
    %49 = vector.broadcast %cst_12 : f32 to vector<16x128xf32>
    %50 = arith.select %36, %7, %49 : vector<16x128xi1>, vector<16x128xf32>
    %cst_13 = arith.constant dense<0.000000e+00> : vector<128xf32>
    %51 = vector.multi_reduction <add>, %50, %cst_13 [0] : vector<16x128xf32> to vector<128xf32>
    %52 = vector.shape_cast %51 : vector<128xf32> to vector<1x128xf32>
    %53 = vector.shape_cast %52 : vector<1x128xf32> to vector<1x1x128xf32>
    %cst_14 = arith.constant dense<0.000000e+00> : vector<1xf32>
    %54 = vector.multi_reduction <add>, %53, %cst_14 [1, 2] : vector<1x1x128xf32> to vector<1xf32>
    %55 = vector.shape_cast %54 : vector<1xf32> to vector<1x1x1xf32>
    %56 = vector.extract %55[0, 0, 0] : f32 from vector<1x1x1xf32>
    %57 = arith.divf %56, %48 : f32
    %58 = vector.broadcast %57 : f32 to vector<16x128xf32>
    %59 = arith.subf %7, %58 : vector<16x128xf32>
    %60 = arith.mulf %59, %59 : vector<16x128xf32>
    %cst_15 = arith.constant 0.000000e+00 : f32
    %61 = vector.broadcast %cst_15 : f32 to vector<16x128xf32>
    %62 = arith.select %36, %60, %61 : vector<16x128xi1>, vector<16x128xf32>
    %cst_16 = arith.constant dense<0.000000e+00> : vector<128xf32>
    %63 = vector.multi_reduction <add>, %62, %cst_16 [0] : vector<16x128xf32> to vector<128xf32>
    %64 = vector.shape_cast %63 : vector<128xf32> to vector<1x128xf32>
    %65 = vector.shape_cast %64 : vector<1x128xf32> to vector<1x1x128xf32>
    %cst_17 = arith.constant dense<0.000000e+00> : vector<1xf32>
    %66 = vector.multi_reduction <add>, %65, %cst_17 [1, 2] : vector<1x1x128xf32> to vector<1xf32>
    %67 = vector.shape_cast %66 : vector<1xf32> to vector<1x1x1xf32>
    %68 = vector.extract %67[0, 0, 0] : f32 from vector<1x1x1xf32>
    %69 = arith.mulf %39, %57 : f32
    %70 = arith.mulf %69, %57 : f32
    %71 = arith.subf %68, %70 : f32
    %cst_18 = arith.constant 1.000000e+00 : f32
    %72 = arith.subf %48, %cst_18 : f32
    %73 = arith.divf %71, %72 : f32
    %cst_19 = arith.constant 1.000000e-10 : f32
    %74 = arith.addf %73, %cst_19 : f32
    %75 = math.sqrt %74 : f32
    %76 = arith.divf %0, %75 : f32
    %77 = arith.mulf %57, %76 : f32
    %78 = arith.subf %1, %77 : f32
    %79 = vector.broadcast %76 : f32 to vector<16x128xf32>
    %80 = arith.mulf %7, %79 : vector<16x128xf32>
    %81 = vector.broadcast %78 : f32 to vector<16x128xf32>
    %82 = arith.addf %80, %81 : vector<16x128xf32>
    %c0_20 = arith.constant 0 : index
    %c0_21 = arith.constant 0 : index
    %83 = vector.load %arg3[%c0_20, %c0_21] : memref<16x128xf32, #tpu.memory_space<vmem>>, vector<16x128xf32>
    tpu.vector_store %arg3[%c0_20, %c0_21], %82 {strides = array<i32>} : memref<16x128xf32, #tpu.memory_space<vmem>>, vector<16x128xf32>,
    return
  }
}

</mosaic_0001>

<llo_original>
// kernel: tpu_custom_call.1
$region0: #{tpu_custom_call.1}
  #allocation0 [shape = 'u32[]', space=smem, size = 0x4, offset = 0x4, fixed_abs, tag = 'smem constant byte address 0x4 - core index']
  #allocation1 [shape = 'u32[144,128]{1,0:T(1,128)}', space=vmem, size = 0x12000, scoped, tag = 'internal scratch']
  %s0 = inlined_call_operand.hbm [shape: f32[3], index: 0, kind: input, shape index: {}]
  %s1 = inlined_call_operand.vmem [shape: s32[2], index: 1, kind: input, shape index: {}]
  %s2 = inlined_call_operand.hbm [shape: f32[16,128], index: 2, kind: input, shape index: {}]
  %s3 = inlined_call_operand.hbm [shape: f32[16,128], index: 3, kind: output, shape index: {}]
  %s4 = sld [smem:[#allocation0]]
  $region34: #{tpu_custom_call.1} parent=0
    _
  %s6 = ssub.s32 1, %s4
  %s7 = scalar_select 0, %s6, %s4
  $region1: #{tpu_custom_call.1} parent=0
    #allocation2 [shape = 'u8[512]{0}', space=smem, size = 0x200, scoped, tag = 'input window, operand 0, single buffered']
    #allocation3 [shape = 's32[1]{0}', space=sflag, size = 0x4, scoped, tag = 'scoped memory for tpu_custom_call.1']
    #allocation4 [shape = 's32[1]{0}', space=sflag, size = 0x4, scoped, tag = 'scoped memory for tpu_custom_call.1']
    #allocation5 [shape = 's32[1]{0}', space=sflag, size = 0x4, scoped, tag = 'scoped memory for tpu_custom_call.1']
    #allocation6 [shape = 's32[1]{0}', space=sflag, size = 0x4, scoped, tag = 'scoped memory for tpu_custom_call.1']
    #allocation7 [shape = 'u8[512]{0}', space=smem, size = 0x200, scoped, tag = 'input window, operand 1, single buffered']
    #allocation8 [shape = 'u8[8192]{0}', space=vmem, size = 0x2000, scoped, tag = 'input window, operand 2, single buffered']
    #allocation9 [shape = 'u8[8192]{0}', space=vmem, size = 0x2000, scoped, tag = 'output window, operand 0, single buffered']
    %8 = vsyncpa [#allocation5], 0
    %9 = vsyncpa [#allocation6], 0
    %10 = vsyncpa [#allocation3], 0
    %11 = vsyncpa [#allocation4], 0
    // Predicated region
    $region2: #{tpu_custom_call.1} parent=1 // pred_check
      _
    $region3: #{tpu_custom_call.1} parent=1 // pred_check_branch
      %13 = sbr.rel (0) target = $region5
    $region4: #{tpu_custom_call.1} parent=1 // pred_region
      %s15 = ssub.s32 16, 16
      %16 = vsyncadd [#allocation5], %s15
      %19 = dma.hbm_to_smem %s0, 16, [#allocation2], [#allocation5]
    $region5: #{tpu_custom_call.1} parent=1 // pred_fallthru
      _
    // Predicated region
    $region6: #{tpu_custom_call.1} parent=1 // pred_check
      _
    $region7: #{tpu_custom_call.1} parent=1 // pred_check_branch
      %21 = sbr.rel (0) target = $region9
    $region8: #{tpu_custom_call.1} parent=1 // pred_region
      %s23 = ssub.s32 16, 16
      %24 = vsyncadd [#allocation6], %s23
      %s26 = sshll.u32 %s1, 4
      %s27 = int_to_ptr.vmem [resolvable:$true] %s26
      %29 = dma.vmem_to_smem %s27, 16, [#allocation7], [#allocation6]
    $region9: #{tpu_custom_call.1} parent=1 // pred_fallthru
      _
    // Predicated region
    $region10: #{tpu_custom_call.1} parent=1 // pred_check
      _
    $region11: #{tpu_custom_call.1} parent=1 // pred_check_branch
      %31 = sbr.rel (0) target = $region13
    $region12: #{tpu_custom_call.1} parent=1 // pred_region
      %s33 = ssub.s32 256, 256
      %34 = vsyncadd [#allocation3], %s33
      %s35 = sshll.u32 [#allocation8], 4
      %s36 = int_to_ptr.vmem [resolvable:$true] %s35
      %41 = dma.hbm_to_vmem [thread:$0]  %s2, 256, %s36, [#allocation3], 128, 128, 8
    $region13: #{tpu_custom_call.1} parent=1 // pred_fallthru
      _
    // Predicated region
    $region14: #{tpu_custom_call.1} parent=1 // pred_check
      _
    $region15: #{tpu_custom_call.1} parent=1 // pred_check_branch
      %43 = sbr.rel (0) target = $region17
    $region16: #{tpu_custom_call.1} parent=1 // pred_region
      %44 = dma.done [#allocation5], 16
    $region17: #{tpu_custom_call.1} parent=1 // pred_fallthru
      _
    // Predicated region
    $region18: #{tpu_custom_call.1} parent=1 // pred_check
      _
    $region19: #{tpu_custom_call.1} parent=1 // pred_check_branch
      %46 = sbr.rel (0) target = $region21
    $region20: #{tpu_custom_call.1} parent=1 // pred_region
      %47 = dma.done [#allocation6], 16
    $region21: #{tpu_custom_call.1} parent=1 // pred_fallthru
      _
    // Predicated region
    $region22: #{tpu_custom_call.1} parent=1 // pred_check
      _
    $region23: #{tpu_custom_call.1} parent=1 // pred_check_branch
      %49 = sbr.rel (0) target = $region25
    $region24: #{tpu_custom_call.1} parent=1 // pred_region
      %50 = dma.done [#allocation3], 256
    $region25: #{tpu_custom_call.1} parent=1 // pred_fallthru
      _
    %51 = sfence
    %s52 = sld [smem:[#allocation2]]
    %s53 = sld [smem:[#allocation2 + $0x1]]
    %s54 = sld [smem:[#allocation2 + $0x2]]
    %s55 = sld [smem:[#allocation7]]
    %s56 = scvt.s32.f32 %s55
    %s57 = sld [smem:[#allocation7 + $0x1]]
    %s58 = scvt.s32.f32 %s57
    %v59 = vld [vmem:[#allocation8] sm:$0xff]
    %v60 = vld [vmem:[#allocation8 + $0x8] sm:$0xff]
    %v61 = vadd.f32 %v59, %v60
    %v62 = vrot.slane %v61, 4
    %v63 = vadd.f32 %v61, %v62
    %v64 = vrot.slane %v63, 2
    %v65 = vadd.f32 %v63, %v64
    %v66 = vrot.slane %v65, 1
    %v67 = vadd.f32 %v65, %v66
    %vm68 = vcmask 1040384
    %v69 = vsel %vm68, %v67, 0.0
    %70 = vadd.xlane.f32.xlu0 %v69
    %v71 = vpop.xlane.xlu0 %70
    %v72 = vrot.slane %v71, 4
    %v73 = vadd.f32 %v71, %v72
    %v74 = vrot.slane %v73, 2
    %v75 = vadd.f32 %v73, %v74
    %v76 = vrot.slane %v75, 1
    %v77 = vadd.f32 %v75, %v76
    %s78 = vtos %v77
    %v79 = vmul.f32 %v59, %v59
    %v80 = vmul.f32 %v60, %v60
    %v81 = vadd.f32 %v79, %v80
    %v82 = vrot.slane %v81, 4
    %v83 = vadd.f32 %v81, %v82
    %v84 = vrot.slane %v83, 2
    %v85 = vadd.f32 %v83, %v84
    %v86 = vrot.slane %v85, 1
    %v87 = vadd.f32 %v85, %v86
    %v88 = vsel %vm68, %v87, 0.0
    %89 = vadd.xlane.f32.xlu0 %v88
    %v90 = vpop.xlane.xlu0 %89
    %v91 = vrot.slane %v90, 4
    %v92 = vadd.f32 %v90, %v91
    %v93 = vrot.slane %v92, 2
    %v94 = vadd.f32 %v92, %v93
    %v95 = vrot.slane %v94, 1
    %v96 = vadd.f32 %v94, %v95
    %s97 = vtos %v96
    %v98 = vstv %s56
    %v99 = vrcp.pop %v98
    %s100 = vtos %v99
    %s101 = smul.f32 %s78, %s100
    %s102 = smul.f32 %s56, %s101
    %s103 = smul.f32 %s102, %s101
    %s104 = ssub.f32 %s97, %s103
    %s105 = ssub.f32 %s56, 1.0
    %v106 = vstv %s105
    %v107 = vrcp.pop %v106
    %s108 = vtos %v107
    %s109 = smul.f32 %s104, %s108
    %s110 = sadd.f32 %s109, 1e-10
    %v111 = vstv %s110
    %v112 = vrsqrt.pop %v111
    %v113 = vmul.f32 %v111, %v112
    %vm114 = vcmp.eq.f32.partialorder %v111, inf
    %v115 = vsel %vm114, %v111, %v113
    %vm116 = vcmp.eq.f32.partialorder %v111, 0.0
    %v117 = vand.u32 %v111, 2147483648
    %v118 = vsel %vm116, %v117, %v115
    %s119 = vtos %v118
    %s120 = smul.f32 %s54, %s119
    %s121 = ssub.f32 %s101, %s120
    %v122 = vstv %s121
    %vm123 = vcmp.gt.f32.partialorder %v59, %v122
    %vm124 = vcmp.gt.f32.partialorder %v60, %v122
    %s125 = sadd.f32 %s101, %s120
    %v126 = vstv %s125
    %vm127 = vcmp.lt.f32.partialorder %v59, %v126
    %vm128 = vcmp.lt.f32.partialorder %v60, %v126
    %vm129 = vmand %vm123, %vm127
    %vm130 = vmand %vm124, %vm128
    %s131 = sand.u32 2147483647, %s101
    %p132 = scmp.lt.f32.partialorder %s131, %s120
    %s133 = scalar_select %p132, %s58, 0.0
    %v134 = vsel %vm129, 1, 0
    %v135 = vsel %vm130, 1, 0
    %v136 = vcvt.s32.f32 %v134
    %v137 = vcvt.s32.f32 %v135
    %v138 = vadd.f32 %v136, %v137
    %v139 = vrot.slane %v138, 4
    %v140 = vadd.f32 %v138, %v139
    %v141 = vrot.slane %v140, 2
    %v142 = vadd.f32 %v140, %v141
    %v143 = vrot.slane %v142, 1
    %v144 = vadd.f32 %v142, %v143
    %v145 = vsel %vm68, %v144, 0.0
    %146 = vadd.xlane.f32.xlu0 %v145
    %v147 = vpop.xlane.xlu0 %146
    %v148 = vrot.slane %v147, 4
    %v149 = vadd.f32 %v147, %v148
    %v150 = vrot.slane %v149, 2
    %v151 = vadd.f32 %v149, %v150
    %v152 = vrot.slane %v151, 1
    %v153 = vadd.f32 %v151, %v152
    %s154 = vtos %v153
    %s155 = ssub.f32 %s154, %s133
    %v156 = vsel %vm129, %v59, 0.0
    %v157 = vsel %vm130, %v60, 0.0
    %v158 = vadd.f32 %v156, %v157
    %v159 = vrot.slane %v158, 4
    %v160 = vadd.f32 %v158, %v159
    %v161 = vrot.slane %v160, 2
    %v162 = vadd.f32 %v160, %v161
    %v163 = vrot.slane %v162, 1
    %v164 = vadd.f32 %v162, %v163
    %v165 = vsel %vm68, %v164, 0.0
    %166 = vadd.xlane.f32.xlu0 %v165
    %v167 = vpop.xlane.xlu0 %166
    %v168 = vrot.slane %v167, 4
    %v169 = vadd.f32 %v167, %v168
    %v170 = vrot.slane %v169, 2
    %v171 = vadd.f32 %v169, %v170
    %v172 = vrot.slane %v171, 1
    %v173 = vadd.f32 %v171, %v172
    %s174 = vtos %v173
    %v175 = vstv %s155
    %v176 = vrcp.pop %v175
    %s177 = vtos %v176
    %s178 = smul.f32 %s174, %s177
    %v179 = vstv %s178
    %v180 = vsub.f32 %v59, %v179
    %v181 = vsub.f32 %v60, %v179
    %v182 = vmul.f32 %v180, %v180
    %v183 = vmul.f32 %v181, %v181
    %v184 = vsel %vm129, %v182, 0.0
    %v185 = vsel %vm130, %v183, 0.0
    %v186 = vadd.f32 %v184, %v185
    %v187 = vrot.slane %v186, 4
    %v188 = vadd.f32 %v186, %v187
    %v189 = vrot.slane %v188, 2
    %v190 = vadd.f32 %v188, %v189
    %v191 = vrot.slane %v190, 1
    %v192 = vadd.f32 %v190, %v191
    %v193 = vsel %vm68, %v192, 0.0
    %194 = vadd.xlane.f32.xlu0 %v193
    %v195 = vpop.xlane.xlu0 %194
    %v196 = vrot.slane %v195, 4
    %v197 = vadd.f32 %v195, %v196
    %v198 = vrot.slane %v197, 2
    %v199 = vadd.f32 %v197, %v198
    %v200 = vrot.slane %v199, 1
    %v201 = vadd.f32 %v199, %v200
    %s202 = vtos %v201
    %s203 = smul.f32 %s133, %s178
    %s204 = smul.f32 %s203, %s178
    %s205 = ssub.f32 %s202, %s204
    %s206 = ssub.f32 %s155, 1.0
    %v207 = vstv %s206
    %v208 = vrcp.pop %v207
    %s209 = vtos %v208
    %s210 = smul.f32 %s205, %s209
    %s211 = sadd.f32 %s210, 1e-10
    %v212 = vstv %s211
    %v213 = vrsqrt.pop %v212
    %v214 = vmul.f32 %v212, %v213
    %vm215 = vcmp.eq.f32.partialorder %v212, inf
    %v216 = vsel %vm215, %v212, %v214
    %vm217 = vcmp.eq.f32.partialorder %v212, 0.0
    %v218 = vand.u32 %v212, 2147483648
    %v219 = vsel %vm217, %v218, %v216
    %s220 = vtos %v219
    %v221 = vstv %s220
    %v222 = vrcp.pop %v221
    %s223 = vtos %v222
    %s224 = smul.f32 %s52, %s223
    %s225 = smul.f32 %s178, %s224
    %s226 = ssub.f32 %s53, %s225
    %v227 = vstv %s224
    %v228 = vmul.f32 %v59, %v227
    %v229 = vmul.f32 %v60, %v227
    %v230 = vstv %s226
    %v231 = vadd.f32 %v228, %v230
    %v232 = vadd.f32 %v229, %v230
    %233 = vst [vmem:[#allocation9] sm:$0xff] %v231
    %234 = vst [vmem:[#allocation9 + $0x8] sm:$0xff] %v232
    // Predicated region
    $region26: #{tpu_custom_call.1} parent=1 // pred_check
      _
    $region27: #{tpu_custom_call.1} parent=1 // pred_check_branch
      %236 = sbr.rel (0) target = $region29
    $region28: #{tpu_custom_call.1} parent=1 // pred_region
      %s238 = ssub.s32 256, 256
      %239 = vsyncadd [#allocation4], %s238
      %s240 = sshll.u32 [#allocation9], 4
      %s241 = int_to_ptr.vmem [resolvable:$true] %s240
      %246 = dma.vmem_to_hbm [thread:$0]  %s241, 256, %s3, [#allocation4], 128, 128, 8
    $region29: #{tpu_custom_call.1} parent=1 // pred_fallthru
      _
    // Predicated region
    $region30: #{tpu_custom_call.1} parent=1 // pred_check
      _
    $region31: #{tpu_custom_call.1} parent=1 // pred_check_branch
      %248 = sbr.rel (0) target = $region33
    $region32: #{tpu_custom_call.1} parent=1 // pred_region
      %249 = dma.done [#allocation4], 256
    $region33: #{tpu_custom_call.1} parent=1 // pred_fallthru
      _
    %250 = vsyncpa [#allocation3], 1
    %251 = vsyncpa [#allocation4], 1
    %252 = vsyncpa [#allocation5], 1
    %253 = vsyncpa [#allocation6], 1

</llo_original>
